<compile_context>
chip_gen: v7x
topology: tpu7x:2x2x1
jax: 0.10.0
libtpu: 0.0.40
codegen_flags: <defaults>
</compile_context>

<pallas_src>
import jax
import jax.numpy as jnp
from jax.experimental import pallas as pl
from jax.experimental.pallas import tpu as pltpu


def packed_linear_kernel(x_ref, w_ref, b_ref, o_ref):
    # x_ref: (TB, R*D) lane-dense packed activations (R logical rows per packed row)
    # w_ref: (R*D, R*C) block-diagonal weight, pinned across grid steps
    # b_ref: (1,  R*C) tiled bias row
    # o_ref: (TB, R*C) lane-dense packed logits
    acc = jnp.dot(x_ref[...], w_ref[...], preferred_element_type=jnp.float32)
    o_ref[...] = (acc + b_ref[...].astype(jnp.float32)).astype(o_ref.dtype)


def _round_up(a, m):
    return ((a + m - 1) // m) * m


def simple_classifier_forward(x, W, b, *, block_packed_rows=2048,
                              small_batch_threshold=8192, force_pallas=False):
    """x: (B, D) f32/bf16, W: (C, D), b: (C,) -> (B, C) in x.dtype."""
    B, D = x.shape
    C, D2 = W.shape
    assert D == D2 and b.shape == (C,)

    # Small-batch fast path: launch overhead dwarfs the work; XLA's dot wins.
    if (not force_pallas) and B < small_batch_threshold:
        return (jnp.dot(x, W.T, preferred_element_type=jnp.float32)
                + b.astype(jnp.float32)).astype(x.dtype)

    # Lane-dense packing factor: R logical rows per packed row, output lane
    # width R*C = 128.  Requires the packed feature width R*D to be a multiple
    # of 128 (true for D=6, C=2 -> R=64, R*D=384).
    if 128 % C != 0:
        return (jnp.dot(x, W.T, preferred_element_type=jnp.float32)
                + b.astype(jnp.float32)).astype(x.dtype)
    R = 128 // C
    if (R * D) % 128 != 0:
        return (jnp.dot(x, W.T, preferred_element_type=jnp.float32)
                + b.astype(jnp.float32)).astype(x.dtype)

    KP = R * D   # packed contraction width (384)
    NP = R * C   # packed output width (128)

    # Pad B to a multiple of the packing factor (zero rows; sliced off at the end).
    B_pad = _round_up(B, R)
    if B_pad != B:
        x = jnp.pad(x, ((0, B_pad - B), (0, 0)))
    P = B_pad // R
    xp = x.reshape(P, KP)                                    # contiguous repack

    # Block-diagonal weight: W_big[r*D + d, r*C + c] = W[c, d]  ==  kron(I_R, W^T)
    W_big = jnp.kron(jnp.eye(R, dtype=W.dtype), W.T)         # (KP, NP)
    b_big = jnp.tile(b, R).reshape(1, NP)                    # (1, NP)

    # Tile the packed-row axis.  Aim for >=2 grid steps when there is enough
    # work (v7x megacore), while keeping each step's payload in the MiB range.
    if P <= 8:
        TB = P
    else:
        TB = min(block_packed_rows, _round_up(pl.cdiv(P, 2), 8))
        TB = min(TB, P)
    grid = (pl.cdiv(P, TB),)

    out_packed = pl.pallas_call(
        packed_linear_kernel,
        out_shape=jax.ShapeDtypeStruct((P, NP), x.dtype),
        grid=grid,
        in_specs=[
            pl.BlockSpec((TB, KP), lambda i: (i, 0)),        # x: streamed over batch
            pl.BlockSpec((KP, NP), lambda i: (0, 0)),        # W_big: pinned
            pl.BlockSpec((1, NP), lambda i: (0, 0)),         # bias row: pinned
        ],
        out_specs=pl.BlockSpec((TB, NP), lambda i: (i, 0)),
        compiler_params=pltpu.CompilerParams(
            dimension_semantics=("parallel",)),              # megacore-shard batch axis
    )(xp, W_big, b_big)

    # (P, R*C) -> (B_pad, C) is a contiguous reshape; slice back to B rows.
    return out_packed.reshape(B_pad, C)[:B]


if __name__ == "__main__":
    input_dim = 6
    num_classes = 2
    batch = 2

    key = jax.random.PRNGKey(0)
    kx, kw, kb, kx2 = jax.random.split(key, 4)

    # Deterministic parameter init (mimics nn.Linear's uniform(-1/sqrt(D), 1/sqrt(D)))
    bound = 1.0 / (input_dim ** 0.5)
    W = jax.random.uniform(kw, (num_classes, input_dim), jnp.float32, -bound, bound)
    b = jax.random.uniform(kb, (num_classes,), jnp.float32, -bound, bound)

    # Small batch, Pallas path forced (single-step grid, B padded to one packed row).
    x = jax.random.normal(kx, (batch, input_dim), jnp.float32)
    y = simple_classifier_forward(x, W, b, force_pallas=True)
    jax.block_until_ready(y)
    y_ref = x @ W.T + b
    assert y.shape == (batch, num_classes)
    assert jnp.allclose(y, y_ref, atol=1e-5, rtol=1e-5)

    # Small batch, default dispatch (fast path, no Pallas launch).
    y_fast = simple_classifier_forward(x, W, b)
    jax.block_until_ready(y_fast)
    assert jnp.allclose(y_fast, y_ref, atol=1e-5, rtol=1e-5)

    # Larger batch: exercises zero-padding of B (600 -> 640), a multi-step grid
    # (grid=(2,)), and a partial last packed block.
    x2 = jax.random.normal(kx2, (600, input_dim), jnp.float32)
    y2 = simple_classifier_forward(x2, W, b, block_packed_rows=8, force_pallas=True)
    jax.block_until_ready(y2)
    assert jnp.allclose(y2, x2 @ W.T + b, atol=1e-5, rtol=1e-5)

    print("KERNEL_OK")
</pallas_src>

<mosaic_0001>
module attributes {stable_mosaic.version = 11 : i64} {
  func.func @packed_linear_kernel(%arg0: i32, %arg1: memref<1x384xf32, #tpu.memory_space<vmem>>, %arg2: memref<384x128xf32, #tpu.memory_space<vmem>>, %arg3: memref<1x128xf32, #tpu.memory_space<vmem>>, %arg4: memref<1x128xf32, #tpu.memory_space<vmem>>) attributes {dimension_semantics = [#tpu.dimension_semantics<parallel>], iteration_bounds = array<i64: 1>, scalar_prefetch = 0 : i64, scratch_operands = 0 : i64, tpu.core_type = #tpu.core_type<tc>, window_params = [{transform_indices = @transform_0, window_bounds = array<i64: 1, 384>}, {pipeline_mode = #tpu.pipeline_mode<synchronous>, transform_indices = @transform_1, window_bounds = array<i64: 384, 128>}, {pipeline_mode = #tpu.pipeline_mode<synchronous>, transform_indices = @transform_2, window_bounds = array<i64: 1, 128>}, {transform_indices = @transform_3, window_bounds = array<i64: 1, 128>}]} {
    %c0 = arith.constant 0 : index
    %c0_0 = arith.constant 0 : index
    %0 = vector.load %arg1[%c0, %c0_0] : memref<1x384xf32, #tpu.memory_space<vmem>>, vector<1x384xf32>
    %c0_1 = arith.constant 0 : index
    %c0_2 = arith.constant 0 : index
    %1 = vector.load %arg2[%c0_1, %c0_2] : memref<384x128xf32, #tpu.memory_space<vmem>>, vector<384x128xf32>
    %cst = arith.constant dense<0.000000e+00> : vector<1x128xf32>
    %2 = tpu.matmul %0, %1, %cst {dimension_numbers = #tpu.dot_dimension_numbers<[1], [0], [0], [1], [0, 0, 1, 1], [], []>} : vector<1x384xf32>, vector<384x128xf32>, vector<1x128xf32> -> vector<1x128xf32>
    %c0_3 = arith.constant 0 : index
    %c0_4 = arith.constant 0 : index
    %3 = vector.load %arg3[%c0_3, %c0_4] : memref<1x128xf32, #tpu.memory_space<vmem>>, vector<1x128xf32>
    %4 = arith.addf %2, %3 : vector<1x128xf32>
    %c0_5 = arith.constant 0 : index
    %c0_6 = arith.constant 0 : index
    %5 = vector.load %arg4[%c0_5, %c0_6] : memref<1x128xf32, #tpu.memory_space<vmem>>, vector<1x128xf32>
    tpu.vector_store %arg4[%c0_5, %c0_6], %4 {strides = array<i32>} : memref<1x128xf32, #tpu.memory_space<vmem>>, vector<1x128xf32>,
    return
  }
  func.func @transform_0(%arg0: i32) -> (i32, i32) {
    %c0_i32 = arith.constant 0 : i32
    %c0_i32_0 = arith.constant 0 : i32
    return %arg0, %c0_i32 : i32, i32
  }
  func.func @transform_1(%arg0: i32) -> (i32, i32) {
    %c0_i32 = arith.constant 0 : i32
    %c0_i32_0 = arith.constant 0 : i32
    %c0_i32_1 = arith.constant 0 : i32
    return %c0_i32, %c0_i32_0 : i32, i32
  }
  func.func @transform_2(%arg0: i32) -> (i32, i32) {
    %c0_i32 = arith.constant 0 : i32
    %c0_i32_0 = arith.constant 0 : i32
    %c0_i32_1 = arith.constant 0 : i32
    return %c0_i32, %c0_i32_0 : i32, i32
  }
  func.func @transform_3(%arg0: i32) -> (i32, i32) {
    %c0_i32 = arith.constant 0 : i32
    %c0_i32_0 = arith.constant 0 : i32
    return %arg0, %c0_i32 : i32, i32
  }
}

</mosaic_0001>

<llo_original>
// kernel: tpu_custom_call.1
$region0: #{tpu_custom_call.1}
  #allocation0 [shape = 'u32[]', space=smem, size = 0x4, offset = 0x4, fixed_abs, tag = 'smem constant byte address 0x4 - core index']
  #allocation1 [shape = 'u32[144,128]{1,0:T(1,128)}', space=vmem, size = 0x12000, scoped, tag = 'internal scratch']
  %s0 = inlined_call_operand.hbm [shape: f32[1,384], index: 0, kind: input, shape index: {}]
  %s1 = inlined_call_operand.hbm [shape: f32[384,128], index: 1, kind: input, shape index: {}]
  %s2 = inlined_call_operand.vmem [shape: f32[1,128], index: 2, kind: input, shape index: {}]
  %s3 = inlined_call_operand.hbm [shape: f32[1,128], index: 3, kind: output, shape index: {}]
  %s4 = sld [smem:[#allocation0]]
  $region30: #{tpu_custom_call.1} parent=0
    _
  %s6 = ssub.s32 1, %s4
  %s7 = scalar_select 0, %s6, %s4
  $region1: #{tpu_custom_call.1} parent=0
    #allocation2 [shape = 'u8[1536]{0}', space=vmem, size = 0x800, scoped, tag = 'input window, operand 0, single buffered']
    #allocation3 [shape = 's32[1]{0}', space=sflag, size = 0x4, scoped, tag = 'scoped memory for tpu_custom_call.1']
    #allocation4 [shape = 's32[1]{0}', space=sflag, size = 0x4, scoped, tag = 'scoped memory for tpu_custom_call.1']
    #allocation5 [shape = 'u8[196608]{0}', space=vmem, size = 0x30000, scoped, tag = 'input window, operand 1, single buffered']
    #allocation6 [shape = 's32[1]{0}', space=sflag, size = 0x4, scoped, tag = 'scoped memory for tpu_custom_call.1']
    #allocation7 [shape = 'u8[512]{0}', space=vmem, size = 0x400, scoped, tag = 'output window, operand 0, single buffered']
    %8 = vsyncpa [#allocation3], 0
    %9 = vsyncpa [#allocation6], 0
    %10 = vsyncpa [#allocation4], 0
    // Predicated region
    $region2: #{tpu_custom_call.1} parent=1 // pred_check
      _
    $region3: #{tpu_custom_call.1} parent=1 // pred_check_branch
      %12 = sbr.rel (0) target = $region5
    $region4: #{tpu_custom_call.1} parent=1 // pred_region
      %s14 = ssub.s32 48, 48
      %15 = vsyncadd [#allocation3], %s14
      %s17 = sshll.u32 [#allocation2], 4
      %s18 = int_to_ptr.vmem [resolvable:$true] %s17
      %20 = dma.hbm_to_vmem [thread:$0]  %s0, 48, %s18, [#allocation3]
    $region5: #{tpu_custom_call.1} parent=1 // pred_fallthru
      _
    // Predicated region
    $region6: #{tpu_custom_call.1} parent=1 // pred_check
      _
    $region7: #{tpu_custom_call.1} parent=1 // pred_check_branch
      %22 = sbr.rel (0) target = $region9
    $region8: #{tpu_custom_call.1} parent=1 // pred_region
      %s24 = ssub.s32 6144, 6144
      %25 = vsyncadd [#allocation6], %s24
      %s26 = sshll.u32 [#allocation5], 4
      %s27 = int_to_ptr.vmem [resolvable:$true] %s26
      %32 = dma.hbm_to_vmem [thread:$0]  %s1, 6144, %s27, [#allocation6], 128, 128, 8
    $region9: #{tpu_custom_call.1} parent=1 // pred_fallthru
      _
    // Predicated region
    $region10: #{tpu_custom_call.1} parent=1 // pred_check
      _
    $region11: #{tpu_custom_call.1} parent=1 // pred_check_branch
      %34 = sbr.rel (0) target = $region13
    $region12: #{tpu_custom_call.1} parent=1 // pred_region
      _
    $region13: #{tpu_custom_call.1} parent=1 // pred_fallthru
      _
    // Predicated region
    $region14: #{tpu_custom_call.1} parent=1 // pred_check
      _
    $region15: #{tpu_custom_call.1} parent=1 // pred_check_branch
      %36 = sbr.rel (0) target = $region17
    $region16: #{tpu_custom_call.1} parent=1 // pred_region
      %37 = dma.done [#allocation3], 48
    $region17: #{tpu_custom_call.1} parent=1 // pred_fallthru
      _
    // Predicated region
    $region18: #{tpu_custom_call.1} parent=1 // pred_check
      _
    $region19: #{tpu_custom_call.1} parent=1 // pred_check_branch
      %39 = sbr.rel (0) target = $region21
    $region20: #{tpu_custom_call.1} parent=1 // pred_region
      %40 = dma.done [#allocation6], 6144
    $region21: #{tpu_custom_call.1} parent=1 // pred_fallthru
      _
    %v41 = vld [vmem:[#allocation2] sm:$0x7]
    %v42 = vld [vmem:[#allocation5] sm:$0xff]
    %v43 = vld [vmem:[#allocation5 + $0x8] sm:$0xff]
    %v44 = vld [vmem:[#allocation5 + $0x10] sm:$0xff]
    %v45 = vld [vmem:[#allocation5 + $0x18] sm:$0xff]
    %v46 = vld [vmem:[#allocation5 + $0x20] sm:$0xff]
    %v47 = vld [vmem:[#allocation5 + $0x28] sm:$0xff]
    %v48 = vld [vmem:[#allocation5 + $0x30] sm:$0xff]
    %v49 = vld [vmem:[#allocation5 + $0x38] sm:$0xff]
    %v50 = vld [vmem:[#allocation5 + $0x40] sm:$0xff]
    %v51 = vld [vmem:[#allocation5 + $0x48] sm:$0xff]
    %v52 = vld [vmem:[#allocation5 + $0x50] sm:$0xff]
    %v53 = vld [vmem:[#allocation5 + $0x58] sm:$0xff]
    %v54 = vld [vmem:[#allocation5 + $0x60] sm:$0xff]
    %v55 = vld [vmem:[#allocation5 + $0x68] sm:$0xff]
    %v56 = vld [vmem:[#allocation5 + $0x70] sm:$0xff]
    %v57 = vld [vmem:[#allocation5 + $0x78] sm:$0xff]
    %v58 = vld [vmem:[#allocation5 + $0x80] sm:$0xff]
    %v59 = vld [vmem:[#allocation5 + $0x88] sm:$0xff]
    %v60 = vld [vmem:[#allocation5 + $0x90] sm:$0xff]
    %v61 = vld [vmem:[#allocation5 + $0x98] sm:$0xff]
    %v62 = vld [vmem:[#allocation5 + $0xa0] sm:$0xff]
    %v63 = vld [vmem:[#allocation5 + $0xa8] sm:$0xff]
    %v64 = vld [vmem:[#allocation5 + $0xb0] sm:$0xff]
    %v65 = vld [vmem:[#allocation5 + $0xb8] sm:$0xff]
    %v66 = vld [vmem:[#allocation5 + $0xc0] sm:$0xff]
    %v67 = vld [vmem:[#allocation5 + $0xc8] sm:$0xff]
    %v68 = vld [vmem:[#allocation5 + $0xd0] sm:$0xff]
    %v69 = vld [vmem:[#allocation5 + $0xd8] sm:$0xff]
    %v70 = vld [vmem:[#allocation5 + $0xe0] sm:$0xff]
    %v71 = vld [vmem:[#allocation5 + $0xe8] sm:$0xff]
    %v72 = vld [vmem:[#allocation5 + $0xf0] sm:$0xff]
    %v73 = vld [vmem:[#allocation5 + $0xf8] sm:$0xff]
    %v74 = vld [vmem:[#allocation5 + $0x100] sm:$0xff]
    %v75 = vld [vmem:[#allocation5 + $0x108] sm:$0xff]
    %v76 = vld [vmem:[#allocation5 + $0x110] sm:$0xff]
    %v77 = vld [vmem:[#allocation5 + $0x118] sm:$0xff]
    %v78 = vld [vmem:[#allocation5 + $0x120] sm:$0xff]
    %v79 = vld [vmem:[#allocation5 + $0x128] sm:$0xff]
    %v80 = vld [vmem:[#allocation5 + $0x130] sm:$0xff]
    %v81 = vld [vmem:[#allocation5 + $0x138] sm:$0xff]
    %v82 = vld [vmem:[#allocation5 + $0x140] sm:$0xff]
    %v83 = vld [vmem:[#allocation5 + $0x148] sm:$0xff]
    %v84 = vld [vmem:[#allocation5 + $0x150] sm:$0xff]
    %v85 = vld [vmem:[#allocation5 + $0x158] sm:$0xff]
    %v86 = vld [vmem:[#allocation5 + $0x160] sm:$0xff]
    %v87 = vld [vmem:[#allocation5 + $0x168] sm:$0xff]
    %v88 = vld [vmem:[#allocation5 + $0x170] sm:$0xff]
    %v89 = vld [vmem:[#allocation5 + $0x178] sm:$0xff]
    %v90 = vld [vmem:[%s2] sm:$0x1]
    %v92 = vlaneseq
    %v93 = vshrl.u32 %v92, 7
    %v94 = vsub.s32 0, %v93
    %v95 = vrot.slane %v41, %v94
    %v96 = vlaneseq
    %v97 = vshrl.u32 %v96, 7
    %v98 = vsub.s32 1, %v97
    %v99 = vrot.slane %v41, %v98
    %v100 = vlaneseq
    %v101 = vshrl.u32 %v100, 7
    %v102 = vsub.s32 2, %v101
    %v103 = vrot.slane %v41, %v102
    %107 = vmatprep.subr.mxu0 0.0
    %108 = vmatpush1.msra.mxu0 %v42
    %109 = vmatprep.subr.mxu0 0.0
    %110 = vmatpush1.msra.mxu0 %v43
    %111 = vmatprep.subr.mxu0 0.0
    %112 = vmatpush1.msra.mxu0 %v44
    %113 = vmatprep.subr.mxu0 0.0
    %114 = vmatpush1.msra.mxu0 %v45
    %115 = vmatprep.subr.mxu0 0.0
    %116 = vmatpush1.msra.mxu0 %v46
    %117 = vmatprep.subr.mxu0 0.0
    %118 = vmatpush1.msra.mxu0 %v47
    %119 = vmatprep.subr.mxu0 0.0
    %120 = vmatpush1.msra.mxu0 %v48
    %121 = vmatprep.subr.mxu0 0.0
    %122 = vmatpush1.msra.mxu0 %v49
    %123 = vmatprep.subr.mxu0 0.0
    %124 = vmatpush1.msra.mxu0 %v50
    %125 = vmatprep.subr.mxu0 0.0
    %126 = vmatpush1.msra.mxu0 %v51
    %127 = vmatprep.subr.mxu0 0.0
    %128 = vmatpush1.msra.mxu0 %v52
    %129 = vmatprep.subr.mxu0 0.0
    %130 = vmatpush1.msra.mxu0 %v53
    %131 = vmatprep.subr.mxu0 0.0
    %132 = vmatpush1.msra.mxu0 %v54
    %133 = vmatprep.subr.mxu0 0.0
    %134 = vmatpush1.msra.mxu0 %v55
    %135 = vmatprep.subr.mxu0 0.0
    %136 = vmatpush1.msra.mxu0 %v56
    %137 = vmatprep.subr.mxu0 0.0
    %138 = vmatpush1.msra.mxu0 %v57
    %139 = vmatprep.subr.mxu0 0.0
    %140 = vmatpush1.msra.mxu0 %v58
    %141 = vmatprep.subr.mxu0 0.0
    %142 = vmatpush1.msra.mxu0 %v59
    %143 = vmatprep.subr.mxu0 0.0
    %144 = vmatpush1.msra.mxu0 %v60
    %145 = vmatprep.subr.mxu0 0.0
    %146 = vmatpush1.msra.mxu0 %v61
    %147 = vmatprep.subr.mxu0 0.0
    %148 = vmatpush1.msra.mxu0 %v62
    %149 = vmatprep.subr.mxu0 0.0
    %150 = vmatpush1.msra.mxu0 %v63
    %151 = vmatprep.subr.mxu0 0.0
    %152 = vmatpush1.msra.mxu0 %v64
    %153 = vmatprep.subr.mxu0 0.0
    %154 = vmatpush1.msra.mxu0 %v65
    %155 = vmatprep.subr.mxu0 0.0
    %156 = vmatpush1.msra.mxu0 %v66
    %157 = vmatprep.subr.mxu0 0.0
    %158 = vmatpush1.msra.mxu0 %v67
    %159 = vmatprep.subr.mxu0 0.0
    %160 = vmatpush1.msra.mxu0 %v68
    %161 = vmatprep.subr.mxu0 0.0
    %162 = vmatpush1.msra.mxu0 %v69
    %163 = vmatprep.subr.mxu0 0.0
    %164 = vmatpush1.msra.mxu0 %v70
    %165 = vmatprep.subr.mxu0 0.0
    %166 = vmatpush1.msra.mxu0 %v71
    %167 = vmatprep.subr.mxu0 0.0
    %168 = vmatpush1.msra.mxu0 %v72
    %169 = vmatprep.subr.mxu0 0.0
    %170 = vmatpush1.msra.mxu0 %v73
    %171 = vmatprep.mubr.f32.mxu0 %v99
    %172 = vmatmul.mubr.f32.gmra.mrb[0].mxu0 %v95
    %v173 = vpop.f32.mrb[0].mxu0
    %v174 = vadd.f32 %v90, %v173
    %v175 = vpop.f32.mrb[0].mxu0
    %176 = vdwg.mxu0
    %177 = vmatprep.subr.mxu0 0.0
    %178 = vmatpush1.msra.mxu0 %v74
    %179 = vmatprep.subr.mxu0 0.0
    %180 = vmatpush1.msra.mxu0 %v75
    %181 = vmatprep.subr.mxu0 0.0
    %182 = vmatpush1.msra.mxu0 %v76
    %183 = vmatprep.subr.mxu0 0.0
    %184 = vmatpush1.msra.mxu0 %v77
    %185 = vmatprep.subr.mxu0 0.0
    %186 = vmatpush1.msra.mxu0 %v78
    %187 = vmatprep.subr.mxu0 0.0
    %188 = vmatpush1.msra.mxu0 %v79
    %189 = vmatprep.subr.mxu0 0.0
    %190 = vmatpush1.msra.mxu0 %v80
    %191 = vmatprep.subr.mxu0 0.0
    %192 = vmatpush1.msra.mxu0 %v81
    %193 = vmatprep.subr.mxu0 0.0
    %194 = vmatpush1.msra.mxu0 %v82
    %195 = vmatprep.subr.mxu0 0.0
    %196 = vmatpush1.msra.mxu0 %v83
    %197 = vmatprep.subr.mxu0 0.0
    %198 = vmatpush1.msra.mxu0 %v84
    %199 = vmatprep.subr.mxu0 0.0
    %200 = vmatpush1.msra.mxu0 %v85
    %201 = vmatprep.subr.mxu0 0.0
    %202 = vmatpush1.msra.mxu0 %v86
    %203 = vmatprep.subr.mxu0 0.0
    %204 = vmatpush1.msra.mxu0 %v87
    %205 = vmatprep.subr.mxu0 0.0
    %206 = vmatpush1.msra.mxu0 %v88
    %207 = vmatprep.subr.mxu0 0.0
    %208 = vmatpush1.msra.mxu0 %v89
    %209 = vmatprep.subr.mxu0 0.0
    %210 = vmatpush1.msra.mxu0 0.0
    %211 = vmatprep.subr.mxu0 0.0
    %212 = vmatpush1.msra.mxu0 0.0
    %213 = vmatprep.subr.mxu0 0.0
    %214 = vmatpush1.msra.mxu0 0.0
    %215 = vmatprep.subr.mxu0 0.0
    %216 = vmatpush1.msra.mxu0 0.0
    %217 = vmatprep.subr.mxu0 0.0
    %218 = vmatpush1.msra.mxu0 0.0
    %219 = vmatprep.subr.mxu0 0.0
    %220 = vmatpush1.msra.mxu0 0.0
    %221 = vmatprep.subr.mxu0 0.0
    %222 = vmatpush1.msra.mxu0 0.0
    %223 = vmatprep.subr.mxu0 0.0
    %224 = vmatpush1.msra.mxu0 0.0
    %225 = vmatprep.subr.mxu0 0.0
    %226 = vmatpush1.msra.mxu0 0.0
    %227 = vmatprep.subr.mxu0 0.0
    %228 = vmatpush1.msra.mxu0 0.0
    %229 = vmatprep.subr.mxu0 0.0
    %230 = vmatpush1.msra.mxu0 0.0
    %231 = vmatprep.subr.mxu0 0.0
    %232 = vmatpush1.msra.mxu0 0.0
    %233 = vmatprep.subr.mxu0 0.0
    %234 = vmatpush1.msra.mxu0 0.0
    %235 = vmatprep.subr.mxu0 0.0
    %236 = vmatpush1.msra.mxu0 0.0
    %237 = vmatprep.subr.mxu0 0.0
    %238 = vmatpush1.msra.mxu0 0.0
    %239 = vmatprep.subr.mxu0 0.0
    %240 = vmatpush1.msra.mxu0 0.0
    %241 = vmatprep.mubr.f32.mxu0 0.0
    %242 = vmatmul.mubr.f32.gmra.mrb[0].mxu0 %v103
    %v243 = vpop.f32.mrb[0].mxu0
    %v244 = vadd.f32 %v174, %v243
    %v245 = vpop.f32.mrb[0].mxu0
    %246 = vdwg.mxu0
    %247 = vst [vmem:[#allocation7] sm:$0x1] %v244
    // Predicated region
    $region22: #{tpu_custom_call.1} parent=1 // pred_check
      _
    $region23: #{tpu_custom_call.1} parent=1 // pred_check_branch
      %249 = sbr.rel (0) target = $region25
    $region24: #{tpu_custom_call.1} parent=1 // pred_region
      %s251 = ssub.s32 16, 16
      %252 = vsyncadd [#allocation4], %s251
      %s254 = sshll.u32 [#allocation7], 4
      %s255 = int_to_ptr.vmem [resolvable:$true] %s254
      %257 = dma.vmem_to_hbm [thread:$0]  %s255, 16, %s3, [#allocation4]
    $region25: #{tpu_custom_call.1} parent=1 // pred_fallthru
      _
    // Predicated region
    $region26: #{tpu_custom_call.1} parent=1 // pred_check
      _
    $region27: #{tpu_custom_call.1} parent=1 // pred_check_branch
      %259 = sbr.rel (0) target = $region29
    $region28: #{tpu_custom_call.1} parent=1 // pred_region
      %260 = dma.done [#allocation4], 16
    $region29: #{tpu_custom_call.1} parent=1 // pred_fallthru
      _
    %261 = vsyncpa [#allocation3], 1
    %262 = vsyncpa [#allocation6], 1
    %263 = vsyncpa [#allocation4], 1

</llo_original>
